<compile_context>
chip_gen: v6e
topology: v6e:2x2x1
jax: 0.10.0
libtpu: 0.0.40
codegen_flags: <defaults>
</compile_context>

<pallas_src>
import jax
import jax.numpy as jnp
from jax.experimental import pallas as pl
from jax.experimental.pallas import tpu as pltpu

# Small, forward-consistent shapes.
B = 8               # len(text_list)
HID = 32            # per-modality feature width
FUSE = 64           # fusion MLP width
NUM_CLASSES = 16    # classifier output width
VOCAB = 64          # synthetic vocabulary for the text embedding
IMG_C = 3           # RGB (only used at param-fold time; null images are zero)

_HI = jax.lax.Precision.HIGHEST  # offline folds / reference in exact f32


def _only_text_cls_kernel(tok_ref, lut_ref, out_ref):
    """logits = one_hot(tok) @ lut  -- single MXU push, everything else folded."""
    bsz = tok_ref.shape[0]
    vocab = lut_ref.shape[0]

    tok = tok_ref[...]                                            # (B, 1) int32
    iota = jax.lax.broadcasted_iota(jnp.int32, (bsz, vocab), 1)   # (B, VOCAB)
    one_hot = (iota == tok).astype(jnp.float32)                   # (B, VOCAB)

    # NOTE: an out-of-range token id yields an all-zero one-hot row and hence
    # all-zero logits (nn.Embedding would raise); token ids are trusted here.
    out_ref[...] = jnp.dot(one_hot, lut_ref[...],
                           preferred_element_type=jnp.float32)    # (B, NC)


def init_params(key):
    """Original (unfolded) synthetic multimodal classifier parameters."""
    ks = jax.random.split(key, 7)
    scale = 0.02
    return {
        "emb":   scale * jax.random.normal(ks[0], (VOCAB, HID), jnp.float32),
        "w_img": scale * jax.random.normal(ks[1], (IMG_C, HID), jnp.float32),
        "b_img": scale * jax.random.normal(ks[2], (1, HID), jnp.float32),
        "w1t":   scale * jax.random.normal(ks[3], (HID, FUSE), jnp.float32),
        "w1i":   scale * jax.random.normal(ks[4], (HID, FUSE), jnp.float32),
        "b1":    jnp.zeros((1, FUSE), jnp.float32),
        "w2":    scale * jax.random.normal(ks[5], (FUSE, NUM_CLASSES), jnp.float32),
        "b2":    scale * jax.random.normal(ks[6], (1, NUM_CLASSES), jnp.float32),
    }


def fold_params(p):
    """One-time offline fold of the whole network into a logits LUT.

    Null images are all black => pooled pixels == 0 => the image branch
    contributes only the constant b_img @ w1i (w_img drops out).  Logits then
    depend solely on the scalar token id, so tabulate them for every vocab
    entry:  lut = relu(emb @ w1t + b_img @ w1i + b1) @ w2 + b2.
    """
    c = jnp.dot(p["b_img"], p["w1i"], precision=_HI) + p["b1"]        # (1, FUSE)
    h = jnp.maximum(jnp.dot(p["emb"], p["w1t"], precision=_HI) + c, 0.0)
    lut = jnp.dot(h, p["w2"], precision=_HI) + p["b2"]                # (VOCAB, NC)
    # For very large batched calls on v5e/v6e a bf16 LUT (+ bf16 one_hot) would
    # use the MXU's native rate; at a 4 KB LUT and small B it buys nothing, so
    # exact f32 is kept.
    return {"lut": lut.astype(jnp.float32)}


@jax.jit
def only_text_cls_forward(token_ids, folded):
    """Mirrors OnlyTextCls.forward: scalar text tokens in, null images folded away.

    Gridless single invocation, all operands VMEM-resident.  To amortize the
    (dominant) dispatch overhead, stack as many token rows as possible into one
    call; only at thousands of rows is it worth adding a ("parallel",) batch
    grid axis so v7x's two TensorCores split the work.
    """
    b = token_ids.shape[0]
    tok = token_ids.reshape(b, 1).astype(jnp.int32)
    lut = folded["lut"]
    vocab, n_cls = lut.shape

    vmem = pl.BlockSpec(memory_space=pltpu.MemorySpace.VMEM)
    return pl.pallas_call(
        _only_text_cls_kernel,
        out_shape=jax.ShapeDtypeStruct((b, n_cls), jnp.float32),
        in_specs=[vmem, vmem],
        out_specs=vmem,
        cost_estimate=pl.CostEstimate(
            flops=2 * b * vocab * n_cls,
            transcendentals=0,
            bytes_accessed=tok.size * 4 + lut.size * 4 + b * n_cls * 4,
        ),
    )(tok, lut)


def _reference_forward(token_ids, p):
    """Pure-JAX reference of the original (unfolded) multimodal forward."""
    b = token_ids.shape[0]
    emb = p["emb"][token_ids]                                         # (B, HID)
    pooled = jnp.zeros((b, IMG_C), jnp.float32)                       # null imgs
    img_feat = jnp.dot(pooled, p["w_img"], precision=_HI) + p["b_img"]
    h = jax.nn.relu(jnp.dot(emb, p["w1t"], precision=_HI)
                    + jnp.dot(img_feat, p["w1i"], precision=_HI) + p["b1"])
    return jnp.dot(h, p["w2"], precision=_HI) + p["b2"]


if __name__ == "__main__":
    key = jax.random.PRNGKey(0)
    k_params, k_tok = jax.random.split(key)
    params = init_params(k_params)
    folded = fold_params(params)

    # text_list: B scalar token ids (the .item() calls in the PyTorch forward).
    token_ids = jax.random.randint(k_tok, (B,), 0, VOCAB, dtype=jnp.int32)

    prediction = only_text_cls_forward(token_ids, folded)
    jax.block_until_ready(prediction)

    assert prediction.shape == (B, NUM_CLASSES)
    assert prediction.dtype == jnp.float32

    # The LUT fold is exact; verify against the unfolded forward.
    ref = _reference_forward(token_ids, params)
    assert jnp.allclose(prediction, ref, atol=1e-5, rtol=1e-4), (
        float(jnp.max(jnp.abs(prediction - ref))))

    print("KERNEL_OK")
</pallas_src>

<mosaic_0001>
module attributes {stable_mosaic.version = 11 : i64} {
  func.func @_only_text_cls_kernel(%arg0: memref<8x1xi32, #tpu.memory_space<vmem>>, %arg1: memref<64x16xf32, #tpu.memory_space<vmem>>, %arg2: memref<8x16xf32, #tpu.memory_space<vmem>>) attributes {dimension_semantics = [], scalar_prefetch = 0 : i64, scratch_operands = 0 : i64, tpu.core_type = #tpu.core_type<tc>} {
    %c0 = arith.constant 0 : index
    %c0_0 = arith.constant 0 : index
    %0 = vector.load %arg0[%c0, %c0_0] : memref<8x1xi32, #tpu.memory_space<vmem>>, vector<8x1xi32>
    %1 = tpu.iota {dimensions = array<i32: 1>} : vector<8x64xi32>
    %2 = vector.broadcast %0 : vector<8x1xi32> to vector<8x64xi32>
    %3 = arith.cmpi eq, %1, %2 : vector<8x64xi32>
    %4 = arith.extui %3 : vector<8x64xi1> to vector<8x64xi32>
    %5 = arith.sitofp %4 : vector<8x64xi32> to vector<8x64xf32>
    %c0_1 = arith.constant 0 : index
    %c0_2 = arith.constant 0 : index
    %6 = vector.load %arg1[%c0_1, %c0_2] : memref<64x16xf32, #tpu.memory_space<vmem>>, vector<64x16xf32>
    %cst = arith.constant dense<0.000000e+00> : vector<8x16xf32>
    %7 = tpu.matmul %5, %6, %cst {dimension_numbers = #tpu.dot_dimension_numbers<[1], [0], [0], [1], [0, 0, 1, 1], [], []>} : vector<8x64xf32>, vector<64x16xf32>, vector<8x16xf32> -> vector<8x16xf32>
    %c0_3 = arith.constant 0 : index
    %c0_4 = arith.constant 0 : index
    %8 = vector.load %arg2[%c0_3, %c0_4] : memref<8x16xf32, #tpu.memory_space<vmem>>, vector<8x16xf32>
    tpu.vector_store %arg2[%c0_3, %c0_4], %7 {strides = array<i32>} : memref<8x16xf32, #tpu.memory_space<vmem>>, vector<8x16xf32>,
    return
  }
}

</mosaic_0001>

<llo_original>
// kernel: only_text_cls_forward.1
$region0: #{only_text_cls_forward.1}
  #allocation0 [shape = 'u32[]', space=smem, size = 0x4, offset = 0x4, fixed_abs, tag = 'smem constant byte address 0x4 - core index']
  #allocation1 [shape = 'u32[144,128]{1,0:T(1,128)}', space=vmem, size = 0x12000, scoped, tag = 'internal scratch']
  %s0 = inlined_call_operand.vmem [shape: s32[8,1], index: 0, kind: input, shape index: {}]
  %s1 = inlined_call_operand.vmem [shape: f32[64,16], index: 1, kind: input, shape index: {}]
  %s2 = inlined_call_operand.hbm [shape: f32[8,16], index: 2, kind: output, shape index: {}]
  %s3 = sld [smem:[#allocation0]]
  $region18: #{only_text_cls_forward.1} parent=0
    _
  %s5 = ssub.s32 1, %s3
  %s6 = scalar_select 0, %s5, %s3
  $region1: #{only_text_cls_forward.1} parent=0
    #allocation2 [shape = 'u8[4096]{0}', space=vmem, size = 0x1000, scoped, tag = 'output window, operand 0, single buffered']
    #allocation3 [shape = 's32[1]{0}', space=sflag, size = 0x4, scoped, tag = 'scoped memory for only_text_cls_forward.1']
    %7 = vsyncpa [#allocation3], 0
    // Predicated region
    $region2: #{only_text_cls_forward.1} parent=1 // pred_check
      _
    $region3: #{only_text_cls_forward.1} parent=1 // pred_check_branch
      %9 = sbr.rel (0) target = $region5
    $region4: #{only_text_cls_forward.1} parent=1 // pred_region
      _
    $region5: #{only_text_cls_forward.1} parent=1 // pred_fallthru
      _
    // Predicated region
    $region6: #{only_text_cls_forward.1} parent=1 // pred_check
      _
    $region7: #{only_text_cls_forward.1} parent=1 // pred_check_branch
      %11 = sbr.rel (0) target = $region9
    $region8: #{only_text_cls_forward.1} parent=1 // pred_region
      _
    $region9: #{only_text_cls_forward.1} parent=1 // pred_fallthru
      _
    %v12 = vld [vmem:[%s0] sm:$0xff]
    %v13 = vlaneseq
    %v14 = vand.u32 %v13, 127
    %15 = vset.pattern.permute.xlu0 0
    %16 = vperm.xlu0 %15, %v12
    %v17 = vpop.permute.xlu0 %16
    %vm18 = vcmp.eq.s32.totalorder %v14, %v17
    %v19 = vsel %vm18, 1, 0
    %v20 = vcvt.s32.f32 %v19
    %v21 = vld [vmem:[%s1] sm:$0xff]
    %v22 = vld [vmem:[%s1 + $0x8] sm:$0xff]
    %v23 = vld [vmem:[%s1 + $0x10] sm:$0xff]
    %v24 = vld [vmem:[%s1 + $0x18] sm:$0xff]
    %v25 = vld [vmem:[%s1 + $0x20] sm:$0xff]
    %v26 = vld [vmem:[%s1 + $0x28] sm:$0xff]
    %v27 = vld [vmem:[%s1 + $0x30] sm:$0xff]
    %v28 = vld [vmem:[%s1 + $0x38] sm:$0xff]
    %vm29 = vcmask 523264
    %v31 = vsel %vm29, %v20, 0
    %33 = vmatprep.subr.mxu0 0.0
    %34 = vmatpush1.msra.mxu0 0.0
    %35 = vmatprep.subr.mxu0 0.0
    %36 = vmatpush1.msra.mxu0 0.0
    %37 = vmatprep.subr.mxu0 0.0
    %38 = vmatpush1.msra.mxu0 0.0
    %39 = vmatprep.subr.mxu0 0.0
    %40 = vmatpush1.msra.mxu0 0.0
    %41 = vmatprep.subr.mxu0 0.0
    %42 = vmatpush1.msra.mxu0 0.0
    %43 = vmatprep.subr.mxu0 0.0
    %44 = vmatpush1.msra.mxu0 0.0
    %45 = vmatprep.subr.mxu0 0.0
    %46 = vmatpush1.msra.mxu0 0.0
    %47 = vmatprep.subr.mxu0 0.0
    %48 = vmatpush1.msra.mxu0 0.0
    %49 = vmatprep.subr.mxu0 0.0
    %50 = vmatpush1.msra.mxu0 %v28
    %51 = vmatprep.subr.mxu0 0.0
    %52 = vmatpush1.msra.mxu0 %v27
    %53 = vmatprep.subr.mxu0 0.0
    %54 = vmatpush1.msra.mxu0 %v26
    %55 = vmatprep.subr.mxu0 0.0
    %56 = vmatpush1.msra.mxu0 %v25
    %57 = vmatprep.subr.mxu0 0.0
    %58 = vmatpush1.msra.mxu0 %v24
    %59 = vmatprep.subr.mxu0 0.0
    %60 = vmatpush1.msra.mxu0 %v23
    %61 = vmatprep.subr.mxu0 0.0
    %62 = vmatpush1.msra.mxu0 %v22
    %63 = vmatprep.subr.mxu0 0.0
    %64 = vmatpush1.msra.mxu0 %v21
    %65 = vmatprep.subr.mxu0 0.0
    %66 = vmatpush2.msra.mxu0 0.0
    %67 = vmatprep.subr.mxu0 0.0
    %68 = vmatpush2.msra.mxu0 0.0
    %69 = vmatprep.subr.mxu0 0.0
    %70 = vmatpush2.msra.mxu0 0.0
    %71 = vmatprep.subr.mxu0 0.0
    %72 = vmatpush2.msra.mxu0 0.0
    %73 = vmatprep.subr.mxu0 0.0
    %74 = vmatpush2.msra.mxu0 0.0
    %75 = vmatprep.subr.mxu0 0.0
    %76 = vmatpush2.msra.mxu0 0.0
    %77 = vmatprep.subr.mxu0 0.0
    %78 = vmatpush2.msra.mxu0 0.0
    %79 = vmatprep.subr.mxu0 0.0
    %80 = vmatpush2.msra.mxu0 0.0
    %81 = vmatprep.subr.mxu0 0.0
    %82 = vmatpush2.msra.mxu0 0.0
    %83 = vmatprep.subr.mxu0 0.0
    %84 = vmatpush2.msra.mxu0 0.0
    %85 = vmatprep.subr.mxu0 0.0
    %86 = vmatpush2.msra.mxu0 0.0
    %87 = vmatprep.subr.mxu0 0.0
    %88 = vmatpush2.msra.mxu0 0.0
    %89 = vmatprep.subr.mxu0 0.0
    %90 = vmatpush2.msra.mxu0 0.0
    %91 = vmatprep.subr.mxu0 0.0
    %92 = vmatpush2.msra.mxu0 0.0
    %93 = vmatprep.subr.mxu0 0.0
    %94 = vmatpush2.msra.mxu0 0.0
    %95 = vmatprep.subr.mxu0 0.0
    %96 = vmatpush2.msra.mxu0 0.0
    %97 = vmatprep.mubr.f32.mxu0 0.0
    %98 = vmatmul.mubr.f32.gmra.mxu0 %v31
    %v99 = vpop.f32.mrf.mxu0
    %v100 = vadd.f32 0.0, %v99
    %v101 = vpop.f32.mrf.mxu0
    %102 = vdwg.mxu0
    %vm103 = vcmask 130048
    %104 = vst.msk [vmem:[#allocation2] sm:$0xff] %vm103, %v100
    // Predicated region
    $region10: #{only_text_cls_forward.1} parent=1 // pred_check
      _
    $region11: #{only_text_cls_forward.1} parent=1 // pred_check_branch
      %106 = sbr.rel (0) target = $region13
    $region12: #{only_text_cls_forward.1} parent=1 // pred_region
      %s108 = ssub.s32 128, 128
      %109 = vsyncadd [#allocation3], %s108
      %s111 = sshll.u32 [#allocation2], 4
      %s112 = int_to_ptr.vmem [resolvable:$true] %s111
      %114 = dma.vmem_to_hbm [thread:$0]  %s112, 128, %s2, [#allocation3]
    $region13: #{only_text_cls_forward.1} parent=1 // pred_fallthru
      _
    // Predicated region
    $region14: #{only_text_cls_forward.1} parent=1 // pred_check
      _
    $region15: #{only_text_cls_forward.1} parent=1 // pred_check_branch
      %116 = sbr.rel (0) target = $region17
    $region16: #{only_text_cls_forward.1} parent=1 // pred_region
      %117 = dma.done [#allocation3], 128
    $region17: #{only_text_cls_forward.1} parent=1 // pred_fallthru
      _
    %118 = vsyncpa [#allocation3], 1

</llo_original>
